<compile_context>
chip_gen: v6e
topology: v6e:2x2x1
jax: 0.10.0
libtpu: 0.0.40
codegen_flags: <defaults>
</compile_context>

<pallas_src>
import numpy as np
import jax
import jax.numpy as jnp
from jax.experimental import pallas as pl
from jax.experimental.pallas import tpu as pltpu

TC_LANES = 128                 # lane width of each component plane
DEFAULT_MAX_ROWS = 512         # 512 rows x 128 lanes = 64K edges / grid step (~1.5 MB/block)
MIN_ROWS_FOR_SPLIT = 16        # split across cores only when >= 2 sublane tiles of work


def _round_up(x, m):
    return ((x + m - 1) // m) * m


def _next_pow2(x):
    return 1 if x <= 1 else 1 << (x - 1).bit_length()


# ----------------------------------------------------------------------------
# Pallas kernel
# ----------------------------------------------------------------------------
def _normal_consistency_kernel(n_ref, out_ref, acc_ref):
    i = pl.program_id(1)                                  # reduction ("arbitrary") axis

    @pl.when(i == 0)
    def _():
        acc_ref[...] = jnp.zeros_like(acc_ref)

    # n_ref: (6, tr, 128) dense component planes.  Leading-dim indexing keeps
    # everything on the VPU (no sublane shuffles, no XLU until the final step).
    dot = (n_ref[0] * n_ref[3]
           + n_ref[1] * n_ref[4]
           + n_ref[2] * n_ref[5])                         # (tr, 128)
    acc_ref[...] += jnp.abs(1.0 - jnp.clip(dot, -1.0, 1.0))

    @pl.when(i == pl.num_programs(1) - 1)
    def _():
        # Single cross-lane + cross-sublane reduction per parallel slice.
        col = jnp.sum(acc_ref[...], axis=1, keepdims=True)      # (tr, 1)
        total = jnp.sum(col, axis=0, keepdims=True)             # (1, 1)
        out_ref[0] = jnp.broadcast_to(total, (8, TC_LANES))     # lane/sublane-aligned block


def _loss_pallas(packed, num_splits, steps, tr):
    """packed: (6, num_splits*steps*tr, 128) float32 -> (num_splits, 8, 128) partial sums."""
    return pl.pallas_call(
        _normal_consistency_kernel,
        out_shape=jax.ShapeDtypeStruct((num_splits, 8, TC_LANES), jnp.float32),
        grid_spec=pltpu.PrefetchScalarGridSpec(
            num_scalar_prefetch=0,
            grid=(num_splits, steps),
            in_specs=[pl.BlockSpec((6, tr, TC_LANES),
                                   lambda p, i: (0, p * steps + i, 0))],
            out_specs=pl.BlockSpec((1, 8, TC_LANES), lambda p, i: (p, 0, 0)),
            scratch_shapes=[pltpu.VMEM((tr, TC_LANES), jnp.float32)],
        ),
        compiler_params=pltpu.CompilerParams(
            dimension_semantics=("parallel", "arbitrary")),
    )(packed)


# ----------------------------------------------------------------------------
# Host-side glue: edge -> face mapping (mirrors the torch.no_grad block).
# TODO(synk): torch.unique / duplicate-index scatter has no Pallas equivalent;
#             kept as host numpy preprocessing (gradient-free in the reference).
# ----------------------------------------------------------------------------
def compute_edge_to_face_mapping(attr_idx):
    attr_idx = np.asarray(attr_idx, dtype=np.int32)
    num_faces = attr_idx.shape[0]

    all_edges = np.concatenate(
        (
            np.stack((attr_idx[:, 0], attr_idx[:, 1]), axis=-1),
            np.stack((attr_idx[:, 1], attr_idx[:, 2]), axis=-1),
            np.stack((attr_idx[:, 2], attr_idx[:, 0]), axis=-1),
        ),
        axis=-1,
    ).reshape(-1, 2)

    order = (all_edges[:, 0] > all_edges[:, 1]).astype(np.int32)
    lo = np.where(order == 1, all_edges[:, 1], all_edges[:, 0])
    hi = np.where(order == 1, all_edges[:, 0], all_edges[:, 1])
    sorted_edges = np.stack((lo, hi), axis=-1)

    unique_edges, idx_map = np.unique(sorted_edges, axis=0, return_inverse=True)
    idx_map = idx_map.reshape(-1)

    tris = np.repeat(np.arange(num_faces, dtype=np.int32), 3)
    tris_per_edge = np.zeros((unique_edges.shape[0], 2), dtype=np.int32)
    mask0 = order == 0
    mask1 = order == 1
    tris_per_edge[idx_map[mask0], 0] = tris[mask0]
    tris_per_edge[idx_map[mask1], 1] = tris[mask1]
    return tris_per_edge


def normal_consistency_loss(face_normals, t_pos_idx, *,
                            max_rows_per_step=DEFAULT_MAX_ROWS):
    """face_normals: (F, 3) float32, t_pos_idx: (F, 3) int32 -> scalar loss."""
    assert max_rows_per_step % 8 == 0
    tpe = compute_edge_to_face_mapping(t_pos_idx)
    num_edges = int(tpe.shape[0])
    if num_edges == 0:
        return jnp.float32(0.0)

    # ---- tiling: rows of 128 edges, bucketed to powers of two ----
    rows = -(-num_edges // TC_LANES)
    num_splits = 2 if rows >= MIN_ROWS_FOR_SPLIT else 1        # megacore on v7x
    rows_per_split = -(-rows // num_splits)
    tr = min(max_rows_per_step, _next_pow2(_round_up(rows_per_split, 8)))
    steps = _next_pow2(-(-rows_per_split // tr))
    rows_pad = num_splits * steps * tr
    e_pad = rows_pad * TC_LANES

    face_normals = jnp.asarray(face_normals, jnp.float32)
    num_faces = face_normals.shape[0]
    # Dummy face with unit normal [1,0,0].  Padded edges index it on both
    # sides, so dot == 1.0 exactly and their loss term is exactly 0.
    fn_ext = jnp.concatenate(
        [face_normals, jnp.array([[1.0, 0.0, 0.0]], jnp.float32)], axis=0)

    # Pad the *index* arrays, not the gathered data.
    idx0 = np.full((e_pad,), num_faces, np.int32)
    idx1 = np.full((e_pad,), num_faces, np.int32)
    idx0[:num_edges] = tpe[:, 0]
    idx1[:num_edges] = tpe[:, 1]

    n0 = fn_ext[jnp.asarray(idx0)]                    # (e_pad, 3) contiguous row gather
    n1 = fn_ext[jnp.asarray(idx1)]                    # (e_pad, 3)
    slab = jnp.concatenate([n0, n1], axis=1)          # (e_pad, 6)
    # One transpose writes the kernel's planar input slab: (6, rows_pad, 128).
    packed = slab.reshape(rows_pad, TC_LANES, 6).transpose(2, 0, 1)

    partial = _loss_pallas(packed, num_splits, steps, tr)     # (num_splits, 8, 128)
    return jnp.sum(partial[:, 0, 0]) / jnp.float32(num_edges)


# ----------------------------------------------------------------------------
# Pure-numpy reference (mirrors the PyTorch forward exactly).
# ----------------------------------------------------------------------------
def reference_loss(face_normals, t_pos_idx):
    tpe = compute_edge_to_face_mapping(t_pos_idx)
    fn = np.asarray(face_normals, np.float32)
    n0 = fn[tpe[:, 0]]
    n1 = fn[tpe[:, 1]]
    term = np.clip(np.sum(n0 * n1, axis=-1, keepdims=True), -1.0, 1.0)
    return np.mean(np.abs(1.0 - term))


def make_grid_mesh(n):
    """(n+1)x(n+1) vertex grid triangulated into 2*n*n faces."""
    i, j = np.meshgrid(np.arange(n), np.arange(n), indexing="ij")
    a = (i * (n + 1) + j).reshape(-1)
    b = a + 1
    c = a + (n + 1)
    d = c + 1
    f1 = np.stack([a, b, c], axis=-1)
    f2 = np.stack([b, d, c], axis=-1)
    return np.concatenate([f1, f2], axis=0).astype(np.int32)


def _unit_normals(key, num_faces):
    v = jax.random.normal(key, (num_faces, 3), dtype=jnp.float32)
    return v / jnp.linalg.norm(v, axis=-1, keepdims=True)


if __name__ == "__main__":
    key0, key1, key2 = jax.random.split(jax.random.PRNGKey(0), 3)

    # Case 1: tiny 4x4 grid mesh (32 faces, 56 edges) -> grid (1, 1).
    t1 = make_grid_mesh(4)
    n1f = _unit_normals(key0, t1.shape[0])
    loss1 = jax.block_until_ready(normal_consistency_loss(n1f, t1))
    ref1 = reference_loss(np.asarray(n1f), t1)
    assert np.allclose(float(loss1), float(ref1), rtol=1e-4, atol=1e-5), (
        float(loss1), float(ref1))

    # Case 2: 32x32 grid mesh (~3.1K edges) with max_rows_per_step=8 so the
    # kernel exercises the parallel-split axis, the multi-step accumulate
    # path, and tail padding.
    t2 = make_grid_mesh(32)
    n2f = _unit_normals(key1, t2.shape[0])
    loss2 = jax.block_until_ready(
        normal_consistency_loss(n2f, t2, max_rows_per_step=8))
    ref2 = reference_loss(np.asarray(n2f), t2)
    assert np.allclose(float(loss2), float(ref2), rtol=1e-4, atol=1e-5), (
        float(loss2), float(ref2))

    # Case 3: 64x64 grid mesh (~12.4K edges) at default tiling -> exercises
    # the default big-tile + 2-way parallel path.
    t3 = make_grid_mesh(64)
    n3f = _unit_normals(key2, t3.shape[0])
    loss3 = jax.block_until_ready(normal_consistency_loss(n3f, t3))
    ref3 = reference_loss(np.asarray(n3f), t3)
    assert np.allclose(float(loss3), float(ref3), rtol=1e-4, atol=1e-5), (
        float(loss3), float(ref3))

    print("KERNEL_OK")
</pallas_src>

<mosaic_0001>
module attributes {stable_mosaic.version = 11 : i64} {
  func.func @_normal_consistency_kernel(%arg0: i32, %arg1: i32, %arg2: memref<6x8x128xf32, #tpu.memory_space<vmem>>, %arg3: memref<1x8x128xf32, #tpu.memory_space<vmem>>, %arg4: memref<8x128xf32, #tpu.memory_space<vmem>>) attributes {dimension_semantics = [#tpu.dimension_semantics<parallel>, #tpu.dimension_semantics<arbitrary>], iteration_bounds = array<i64: 1, 1>, scalar_prefetch = 0 : i64, scratch_operands = 1 : i64, tpu.core_type = #tpu.core_type<tc>, window_params = [{transform_indices = @transform_0, window_bounds = array<i64: 6, 8, 128>}, {transform_indices = @transform_1, window_bounds = array<i64: 1, 8, 128>}]} {
    %c0_i32 = arith.constant 0 : i32
    %0 = arith.cmpi eq, %arg1, %c0_i32 : i32
    %1 = arith.extui %0 : i1 to i32
    %c0_i32_0 = arith.constant 0 : i32
    %2 = arith.cmpi ne, %1, %c0_i32_0 : i32
    scf.if %2 {
      %cst_21 = arith.constant 0.000000e+00 : f32
      %33 = vector.broadcast %cst_21 : f32 to vector<8x128xf32>
      %c0_22 = arith.constant 0 : index
      %c0_23 = arith.constant 0 : index
      %34 = vector.load %arg4[%c0_22, %c0_23] : memref<8x128xf32, #tpu.memory_space<vmem>>, vector<8x128xf32>
      tpu.vector_store %arg4[%c0_22, %c0_23], %33 {strides = array<i32>} : memref<8x128xf32, #tpu.memory_space<vmem>>, vector<8x128xf32>,
    } else {
    }
    %c0 = arith.constant 0 : index
    %c0_1 = arith.constant 0 : index
    %c0_2 = arith.constant 0 : index
    %3 = vector.load %arg2[%c0, %c0_1, %c0_2] : memref<6x8x128xf32, #tpu.memory_space<vmem>>, vector<1x8x128xf32>
    %4 = vector.shape_cast %3 : vector<1x8x128xf32> to vector<8x128xf32>
    %c3 = arith.constant 3 : index
    %c0_3 = arith.constant 0 : index
    %c0_4 = arith.constant 0 : index
    %5 = vector.load %arg2[%c3, %c0_3, %c0_4] : memref<6x8x128xf32, #tpu.memory_space<vmem>>, vector<1x8x128xf32>
    %6 = vector.shape_cast %5 : vector<1x8x128xf32> to vector<8x128xf32>
    %7 = arith.mulf %4, %6 : vector<8x128xf32>
    %c1 = arith.constant 1 : index
    %c0_5 = arith.constant 0 : index
    %c0_6 = arith.constant 0 : index
    %8 = vector.load %arg2[%c1, %c0_5, %c0_6] : memref<6x8x128xf32, #tpu.memory_space<vmem>>, vector<1x8x128xf32>
    %9 = vector.shape_cast %8 : vector<1x8x128xf32> to vector<8x128xf32>
    %c4 = arith.constant 4 : index
    %c0_7 = arith.constant 0 : index
    %c0_8 = arith.constant 0 : index
    %10 = vector.load %arg2[%c4, %c0_7, %c0_8] : memref<6x8x128xf32, #tpu.memory_space<vmem>>, vector<1x8x128xf32>
    %11 = vector.shape_cast %10 : vector<1x8x128xf32> to vector<8x128xf32>
    %12 = arith.mulf %9, %11 : vector<8x128xf32>
    %13 = arith.addf %7, %12 : vector<8x128xf32>
    %c2 = arith.constant 2 : index
    %c0_9 = arith.constant 0 : index
    %c0_10 = arith.constant 0 : index
    %14 = vector.load %arg2[%c2, %c0_9, %c0_10] : memref<6x8x128xf32, #tpu.memory_space<vmem>>, vector<1x8x128xf32>
    %15 = vector.shape_cast %14 : vector<1x8x128xf32> to vector<8x128xf32>
    %c5 = arith.constant 5 : index
    %c0_11 = arith.constant 0 : index
    %c0_12 = arith.constant 0 : index
    %16 = vector.load %arg2[%c5, %c0_11, %c0_12] : memref<6x8x128xf32, #tpu.memory_space<vmem>>, vector<1x8x128xf32>
    %17 = vector.shape_cast %16 : vector<1x8x128xf32> to vector<8x128xf32>
    %18 = arith.mulf %15, %17 : vector<8x128xf32>
    %19 = arith.addf %13, %18 : vector<8x128xf32>
    %c0_13 = arith.constant 0 : index
    %c0_14 = arith.constant 0 : index
    %20 = vector.load %arg4[%c0_13, %c0_14] : memref<8x128xf32, #tpu.memory_space<vmem>>, vector<8x128xf32>
    %cst = arith.constant -1.000000e+00 : f32
    %cst_15 = arith.constant 1.000000e+00 : f32
    %21 = vector.broadcast %cst : f32 to vector<8x128xf32>
    %22 = arith.maximumf %21, %19 : vector<8x128xf32>
    %23 = vector.broadcast %cst_15 : f32 to vector<8x128xf32>
    %24 = arith.minimumf %23, %22 : vector<8x128xf32>
    %cst_16 = arith.constant 1.000000e+00 : f32
    %25 = vector.broadcast %cst_16 : f32 to vector<8x128xf32>
    %26 = arith.subf %25, %24 : vector<8x128xf32>
    %27 = math.absf %26 : vector<8x128xf32>
    %28 = arith.addf %20, %27 : vector<8x128xf32>
    %c0_17 = arith.constant 0 : index
    %c0_18 = arith.constant 0 : index
    %29 = vector.load %arg4[%c0_17, %c0_18] : memref<8x128xf32, #tpu.memory_space<vmem>>, vector<8x128xf32>
    tpu.vector_store %arg4[%c0_17, %c0_18], %28 {strides = array<i32>} : memref<8x128xf32, #tpu.memory_space<vmem>>, vector<8x128xf32>,
    %c0_i32_19 = arith.constant 0 : i32
    %30 = arith.cmpi eq, %arg1, %c0_i32_19 : i32
    %31 = arith.extui %30 : i1 to i32
    %c0_i32_20 = arith.constant 0 : i32
    %32 = arith.cmpi ne, %31, %c0_i32_20 : i32
    scf.if %32 {
      %c0_21 = arith.constant 0 : index
      %c0_22 = arith.constant 0 : index
      %33 = vector.load %arg4[%c0_21, %c0_22] : memref<8x128xf32, #tpu.memory_space<vmem>>, vector<8x128xf32>
      %cst_23 = arith.constant dense<0.000000e+00> : vector<8xf32>
      %34 = vector.multi_reduction <add>, %33, %cst_23 [1] : vector<8x128xf32> to vector<8xf32>
      %35 = vector.shape_cast %34 : vector<8xf32> to vector<8x1xf32>
      %cst_24 = arith.constant dense<0.000000e+00> : vector<1xf32>
      %36 = vector.multi_reduction <add>, %35, %cst_24 [0] : vector<8x1xf32> to vector<1xf32>
      %37 = vector.shape_cast %36 : vector<1xf32> to vector<1x1xf32>
      %38 = vector.shape_cast %37 : vector<1x1xf32> to vector<1x1xf32>
      %39 = vector.broadcast %38 : vector<1x1xf32> to vector<8x128xf32>
      %c0_25 = arith.constant 0 : index
      %c0_26 = arith.constant 0 : index
      %c0_27 = arith.constant 0 : index
      %40 = vector.load %arg3[%c0_25, %c0_26, %c0_27] : memref<1x8x128xf32, #tpu.memory_space<vmem>>, vector<1x8x128xf32>
      %41 = vector.shape_cast %40 : vector<1x8x128xf32> to vector<8x128xf32>
      %42 = vector.shape_cast %39 : vector<8x128xf32> to vector<1x8x128xf32>
      tpu.vector_store %arg3[%c0_25, %c0_26, %c0_27], %42 {strides = array<i32>} : memref<1x8x128xf32, #tpu.memory_space<vmem>>, vector<1x8x128xf32>,
    } else {
    }
    return
  }
  func.func @transform_0(%arg0: i32, %arg1: i32) -> (i32, i32, i32) {
    %c1_i32 = arith.constant 1 : i32
    %0 = arith.muli %arg0, %c1_i32 : i32
    %1 = arith.addi %0, %arg1 : i32
    %c0_i32 = arith.constant 0 : i32
    %c0_i32_0 = arith.constant 0 : i32
    %c0_i32_1 = arith.constant 0 : i32
    return %c0_i32, %1, %c0_i32_0 : i32, i32, i32
  }
  func.func @transform_1(%arg0: i32, %arg1: i32) -> (i32, i32, i32) {
    %c0_i32 = arith.constant 0 : i32
    %c0_i32_0 = arith.constant 0 : i32
    %c0_i32_1 = arith.constant 0 : i32
    return %arg0, %c0_i32, %c0_i32_0 : i32, i32, i32
  }
}

</mosaic_0001>

<llo_original>
// kernel: tpu_custom_call.1
$region0: #{tpu_custom_call.1}
  #allocation0 [shape = 'u32[]', space=smem, size = 0x4, offset = 0x4, fixed_abs, tag = 'smem constant byte address 0x4 - core index']
  #allocation1 [shape = 'u32[144,128]{1,0:T(1,128)}', space=vmem, size = 0x12000, scoped, tag = 'internal scratch']
  #allocation2 [shape = 'f32[8,128]{1,0:T(8,128)}', space=vmem, size = 0x1000, scoped, tag = 'scratch operand']
  %s0 = inlined_call_operand.hbm [shape: f32[6,8,128], index: 0, kind: input, shape index: {}]
  %s1 = inlined_call_operand.hbm [shape: f32[1,8,128], index: 1, kind: output, shape index: {}]
  %s2 = sld [smem:[#allocation0]]
  $region26: #{tpu_custom_call.1} parent=0
    _
  %s4 = ssub.s32 1, %s2
  %s5 = scalar_select 0, %s4, %s2
  $region1: #{tpu_custom_call.1} parent=0
    #allocation3 [shape = 'u8[24576]{0}', space=vmem, size = 0x6000, scoped, tag = 'input window, operand 0, single buffered']
    #allocation4 [shape = 's32[1]{0}', space=sflag, size = 0x4, scoped, tag = 'scoped memory for tpu_custom_call.1']
    #allocation5 [shape = 's32[1]{0}', space=sflag, size = 0x4, scoped, tag = 'scoped memory for tpu_custom_call.1']
    #allocation6 [shape = 'u8[4096]{0}', space=vmem, size = 0x1000, scoped, tag = 'output window, operand 0, single buffered']
    %6 = vsyncpa [#allocation4], 0
    %7 = vsyncpa [#allocation5], 0
    // Predicated region
    $region2: #{tpu_custom_call.1} parent=1 // pred_check
      _
    $region3: #{tpu_custom_call.1} parent=1 // pred_check_branch
      %9 = sbr.rel (0) target = $region5
    $region4: #{tpu_custom_call.1} parent=1 // pred_region
      %s10 = sadd.s32 0, 0
      %s12 = ssub.s32 768, 768
      %13 = vsyncadd [#allocation4], %s12
      %s14 = smul.addr %s10, 128
      %s15 = scalar_lea.hbm %s0, %s14
      %s16 = sshll.u32 [#allocation3], 4
      %s17 = int_to_ptr.vmem [resolvable:$true] %s16
      %22 = dma.hbm_to_vmem [thread:$0]  %s15, 768, %s17, [#allocation4], 128, 128, 8
    $region5: #{tpu_custom_call.1} parent=1 // pred_fallthru
      _
    // Predicated region
    $region6: #{tpu_custom_call.1} parent=1 // pred_check
      _
    $region7: #{tpu_custom_call.1} parent=1 // pred_check_branch
      %24 = sbr.rel (0) target = $region9
    $region8: #{tpu_custom_call.1} parent=1 // pred_region
      %25 = dma.done [#allocation4], 768
    $region9: #{tpu_custom_call.1} parent=1 // pred_fallthru
      _
    %s26 = sadd.s32 0, 0
    %p27 = scmp.eq.s32.totalorder 0, 0
    // Predicated region
    $region10: #{tpu_custom_call.1} parent=1 // pred_check
      %p28 = pneg %p27
    $region11: #{tpu_custom_call.1} parent=1 // pred_check_branch
      %30 = sbr.rel (%p28) target = $region13
    $region12: #{tpu_custom_call.1} parent=1 // pred_region
      %31 = vst [vmem:[#allocation2] sm:$0xff] 0.0
    $region13: #{tpu_custom_call.1} parent=1 // pred_fallthru
      _
    %v32 = vld [vmem:[#allocation3] sm:$0xff]
    %s33 = scalar_lea.vmem [#allocation3], 24
    %v34 = vld [vmem:[%s33] sm:$0xff]
    %v35 = vmul.f32 %v32, %v34
    %s36 = scalar_lea.vmem [#allocation3], 8
    %v37 = vld [vmem:[%s36] sm:$0xff]
    %s38 = scalar_lea.vmem [#allocation3], 32
    %v39 = vld [vmem:[%s38] sm:$0xff]
    %v40 = vmul.f32 %v37, %v39
    %v41 = vadd.f32 %v35, %v40
    %s42 = scalar_lea.vmem [#allocation3], 16
    %v43 = vld [vmem:[%s42] sm:$0xff]
    %s44 = scalar_lea.vmem [#allocation3], 40
    %v45 = vld [vmem:[%s44] sm:$0xff]
    %v46 = vmul.f32 %v43, %v45
    %v47 = vadd.f32 %v41, %v46
    %v48 = vld [vmem:[#allocation2] sm:$0xff]
    %v49 = vmax.f32 %v47, -1.0
    %v50 = vmin.f32 %v49, 1.0
    %v51 = vsub.f32 1.0, %v50
    %v52 = vand.u32 2147483647, %v51
    %v53 = vadd.f32 %v48, %v52
    %54 = vst [vmem:[#allocation2] sm:$0xff] %v53
    // Predicated region
    $region14: #{tpu_custom_call.1} parent=1 // pred_check
      %p55 = pneg %p27
    $region15: #{tpu_custom_call.1} parent=1 // pred_check_branch
      %57 = sbr.rel (%p55) target = $region17
    $region16: #{tpu_custom_call.1} parent=1 // pred_region
      %v58 = vld [vmem:[#allocation2] sm:$0xff]
      %59 = vadd.xlane.f32.xlu0 %v58
      %v60 = vpop.xlane.xlu0 %59
      %v61 = vrot.slane %v60, 4
      %v62 = vadd.f32 %v60, %v61
      %v63 = vrot.slane %v62, 2
      %v64 = vadd.f32 %v62, %v63
      %v65 = vrot.slane %v64, 1
      %v66 = vadd.f32 %v64, %v65
      %67 = vst [vmem:[#allocation6] sm:$0xff] %v66
    $region17: #{tpu_custom_call.1} parent=1 // pred_fallthru
      _
    // Predicated region
    $region18: #{tpu_custom_call.1} parent=1 // pred_check
      _
    $region19: #{tpu_custom_call.1} parent=1 // pred_check_branch
      %69 = sbr.rel (0) target = $region21
    $region20: #{tpu_custom_call.1} parent=1 // pred_region
      %s71 = ssub.s32 128, 128
      %72 = vsyncadd [#allocation5], %s71
      %s74 = sshll.u32 [#allocation6], 4
      %s75 = int_to_ptr.vmem [resolvable:$true] %s74
      %77 = dma.vmem_to_hbm [thread:$0]  %s75, 128, %s1, [#allocation5]
    $region21: #{tpu_custom_call.1} parent=1 // pred_fallthru
      _
    // Predicated region
    $region22: #{tpu_custom_call.1} parent=1 // pred_check
      _
    $region23: #{tpu_custom_call.1} parent=1 // pred_check_branch
      %79 = sbr.rel (0) target = $region25
    $region24: #{tpu_custom_call.1} parent=1 // pred_region
      %80 = dma.done [#allocation5], 128
    $region25: #{tpu_custom_call.1} parent=1 // pred_fallthru
      _
    %81 = vsyncpa [#allocation4], 1
    %82 = vsyncpa [#allocation5], 1

</llo_original>
